<compile_context>
chip_gen: v5e
topology: v5e:2x2
jax: 0.10.0
libtpu: 0.0.40
codegen_flags: <defaults>
</compile_context>

<pallas_src>
import functools

import jax
import jax.numpy as jnp
from jax import lax
from jax.experimental import pallas as pl
from jax.experimental.pallas import tpu as pltpu


# --------------------------------------------------------------------------- #
# Generation-aware VMEM budgeting (v5e/v6e: 128 MiB, v7x: 64 MiB per TC).      #
# --------------------------------------------------------------------------- #
def _pad(n, m):
    return ((n + m - 1) // m) * m


def _vmem_limit_bytes():
    try:
        phys = pltpu.get_tpu_info().vmem_capacity_bytes
    except Exception:                      # query unavailable -> assume v7x (64 MiB)
        phys = 64 * 1024 * 1024
    # ~25% headroom for Mosaic-internal scratch; caps at 96 MiB (v5e/v6e) and
    # 48 MiB (v7x), matching the review's per-generation guidance.
    return int(min(phys * 3 // 4, 96 * 1024 * 1024))


def _main_vmem_bytes(tq, s, dq, hkh, hkv_cols, dv, h, in_bytes):
    """Conservative VMEM estimate for one main-kernel grid step (incl. padding)."""
    em = 2 * h * _pad(tq, 8) * _pad(s, 128) * 2                 # bf16 em, double-buffered
    xq = 2 * _pad(tq, 8) * _pad(dq, 128) * in_bytes             # query tile
    xs = 2 * _pad(s, 8) * _pad(dq, 128) * in_bytes              # full-sequence block
    w = 2 * in_bytes * (_pad(dq, 8) * _pad(hkh, 128)
                        + _pad(dq, 8) * _pad(hkv_cols, 128)
                        + _pad(hkv_cols - hkh, 8) * _pad(dv, 128))
    out = 2 * _pad(tq, 8) * _pad(dv, 128) * in_bytes
    # live f32 temporaries: K|V projection result, Q projection, ~3 (TQ,S)
    # score/prob tiles (incl. the f32 upcast of one em head).
    inter = 4 * (_pad(s, 8) * _pad(hkv_cols, 128)
                 + _pad(tq, 8) * _pad(hkh, 128)
                 + 3 * _pad(tq, 8) * _pad(s, 128))
    return em + xq + xs + w + out + inter


def _pick_query_tile(s, dq, hkh, hkv_cols, dv, h, in_bytes, vmem_limit):
    budget = int(vmem_limit * 0.85)
    cands = [t for t in (512, 256, 128, 64, 32, 16, 8) if s % t == 0]
    if s <= 512 and s not in cands:
        cands.append(s)                    # full-sequence tile is always legal
    cands.sort(reverse=True)
    if not cands:
        # TODO(synk): pad S to a multiple of 8 for awkward sequence lengths.
        return s
    for t in cands:
        if _main_vmem_bytes(t, s, dq, hkh, hkv_cols, dv, h, in_bytes) <= budget:
            return t
    return cands[-1]


def _edge_vmem_bytes(tqe, s, de, h, e_bytes):
    x = 2 * _pad(tqe * s, 8) * _pad(de, 128) * e_bytes          # lane-padded edge tile
    o = 2 * h * _pad(tqe, 8) * _pad(s, 128) * 2                 # bf16 output tile
    return x + o


def _pick_edge_tile(s, de, h, e_bytes, vmem_limit):
    if s % 8 != 0:
        # Full (S*S, De) block per batch (block == full dim is always legal).
        # TODO(synk): pad S for large non-multiple-of-8 sequence lengths.
        return s
    budget = int(vmem_limit * 0.5)
    for t in (32, 16, 8, 4, 2, 1):         # cap unroll at 32 rows per grid step
        if s % t == 0 and _edge_vmem_bytes(t, s, de, h, e_bytes) <= budget:
            return t
    return 1


# --------------------------------------------------------------------------- #
# Kernel 1: edge-multiplier pre-kernel.                                        #
# --------------------------------------------------------------------------- #
def _edge_fold_kernel(e_ref, wt_ref, o_ref, *, tqe, seq):
    """Grid step = (batch b, query-row tile qe).

    e_ref : (1, TQE*S, De)  raw edge rows for TQE query positions (lane dim De)
    wt_ref: (H, De)         per-head fold weights (edge embedding + mean folded)
    o_ref : (1, H, TQE, S)  bf16 edge multiplier, keys lane-dense
    """
    wt = wt_ref[...]                                            # (H, De)
    for q in range(tqe):                                        # static unroll
        xq = e_ref[0, pl.ds(q * seq, seq), :]                   # (S, De)
        # (H, De) x (S, De)^T on the MXU -> (H, S): no reshape/transpose relayout.
        y = lax.dot_general(wt, xq, (((1,), (1,)), ((), ())),
                            preferred_element_type=jnp.float32)
        o_ref[0, :, q, :] = y.astype(o_ref.dtype)


# --------------------------------------------------------------------------- #
# Kernel 2: attention.                                                         #
# --------------------------------------------------------------------------- #
def _gmha_kernel(xq_ref, x_ref, em_ref, wq_ref, wkv_ref, wr_ref, o_ref, *,
                 num_head, keys_per_head, values_per_head):
    """One grid step == (batch b, query tile q). All accumulation in f32.

    xq_ref : (1, TQ, Dq)   query tile
    x_ref  : (1, S, Dq)    full sequence (K/V source; block constant across q)
    em_ref : (1, H, TQ, S) bf16 edge multiplier (lane-dense in S)
    wq_ref : (Dq, H*kh)    scale already folded in
    wkv_ref: (Dq, H*kh + H*vh)
    wr_ref : (H*vh, Dv)
    o_ref  : (1, TQ, Dv)
    """
    H, kph, vph = num_head, keys_per_head, values_per_head
    Hkh = H * kph

    xq = xq_ref[0]                                              # (TQ, Dq)
    x = x_ref[0]                                                # (S, Dq)

    # Fused projections (MXU): Q only over the query tile, K|V over the full seq.
    # TODO(synk): on v6e, K|V could be hoisted to a VMEM scratch under
    #             @pl.when(pl.program_id(1)==0) (requires q axis "arbitrary").
    q = jnp.dot(xq, wq_ref[...], preferred_element_type=jnp.float32)   # (TQ, H*kh)
    kv = jnp.dot(x, wkv_ref[...], preferred_element_type=jnp.float32)  # (S, H*(kh+vh))
    k = kv[:, :Hkh]
    v = kv[:, Hkh:]

    # Softmax denominator via P @ ones on the MXU (frees the XLU row-sum).
    ones_col = jnp.ones((x.shape[0], 1), jnp.float32)           # hoisted out of loop

    heads = []
    # Small static head loop.  8-lane head slices / K=8 matmuls are kept as-is:
    # review marks batching over H as second-order, to be gated on a bundle dump.
    for h in range(H):
        qh = q[:, h * kph:(h + 1) * kph]                        # (TQ, kh)
        kk = k[:, h * kph:(h + 1) * kph]                        # (S, kh)
        vv = v[:, h * vph:(h + 1) * vph]                        # (S, vh)

        # scores = (scale*Q_h) @ K_h^T, then * edge multiplier (scale pre-folded).
        a = lax.dot_general(qh, kk, (((1,), (1,)), ((), ())),
                            preferred_element_type=jnp.float32)  # (TQ, S)
        a = a * em_ref[0, h].astype(jnp.float32)

        # Numerically-stable softmax over keys (full key row resident).
        a = a - jnp.max(a, axis=-1, keepdims=True)
        p = jnp.exp(a)   # TODO(synk): bf16 exp on v7x if the EUP slot saturates.

        oh = jnp.dot(p, vv, preferred_element_type=jnp.float32)        # (TQ, vh)
        l = jnp.dot(p, ones_col, preferred_element_type=jnp.float32)   # (TQ, 1)
        # Fold 1/l after P@V: EUP reciprocal + small multiply instead of a
        # (TQ, S) VPU divide or an XLU row-sum.
        heads.append(oh * pl.reciprocal(l, approx=True))

    # Single recombine matmul on the concatenated heads (K = H*vh).
    o_cat = jnp.concatenate(heads, axis=-1)                             # (TQ, H*vh)
    out = jnp.dot(o_cat, wr_ref[...], preferred_element_type=jnp.float32)
    o_ref[0] = out.astype(o_ref.dtype)


# --------------------------------------------------------------------------- #
# Wrapper.                                                                     #
# --------------------------------------------------------------------------- #
def graph_multi_head_attention(queries, edge_attributes, params, *, num_head):
    B, S, Dq = queries.shape
    De = edge_attributes.shape[-1]
    H = num_head
    kph = params["wq"].shape[0] // H
    vph = params["wv"].shape[0] // H
    eph = params["we"].shape[0] // H
    key_size = params["wk"].shape[1]
    value_size = params["wr"].shape[0]
    scale = float(key_size) ** (-0.5)
    dtype = queries.dtype
    itemsize = jnp.dtype(dtype).itemsize
    e_itemsize = jnp.dtype(edge_attributes.dtype).itemsize

    vmem_limit = _vmem_limit_bytes()

    # ---- edge multiplier pre-kernel: em[b,h,q,k] = sum_d edge[b,q,k,d]*wem[d,h]
    # (edge embedding with the per-head mean folded into wem).  Written straight
    # to (B, H, S, S) bf16 — no XLA transpose pass over the B*H*S^2 tensor.
    wem_t = (params["we"].T.reshape(De, H, eph).mean(axis=-1).T
             ).astype(edge_attributes.dtype)                            # (H, De)
    TQE = _pick_edge_tile(S, De, H, e_itemsize, vmem_limit)
    nqe = S // TQE
    edge_flat = edge_attributes.reshape(B, S * S, De)                   # free view

    edge_cost = pl.CostEstimate(
        flops=int(2 * B * S * S * De * H),
        transcendentals=0,
        bytes_accessed=int(edge_flat.size * e_itemsize + B * H * S * S * 2))

    em = pl.pallas_call(
        functools.partial(_edge_fold_kernel, tqe=TQE, seq=S),
        out_shape=jax.ShapeDtypeStruct((B, H, S, S), jnp.bfloat16),
        grid_spec=pltpu.PrefetchScalarGridSpec(
            num_scalar_prefetch=0,
            grid=(B, nqe),
            in_specs=[
                pl.BlockSpec((1, TQE * S, De), lambda b, q: (b, q, 0)),
                pl.BlockSpec((H, De), lambda b, q: (0, 0)),
            ],
            out_specs=pl.BlockSpec((1, H, TQE, S), lambda b, q: (b, 0, q, 0)),
        ),
        compiler_params=pltpu.CompilerParams(
            dimension_semantics=("parallel", "parallel"),
            vmem_limit_bytes=vmem_limit),
        cost_estimate=edge_cost,
    )(edge_flat, wem_t)

    # ---- main attention kernel ------------------------------------------------
    # `scale` folded into the Q projection weight (removes the per-head (TQ,S)
    # VPU multiply inside the kernel).
    wqT = (params["wq"].T * scale).astype(dtype)                        # (Dq, H*kh)
    wkvT = jnp.concatenate([params["wk"].T, params["wv"].T], axis=1).astype(dtype)
    wrT = params["wr"].T.astype(dtype)                                  # (H*vh, Dv)

    Hkh = H * kph
    hkv_cols = H * (kph + vph)
    TQ = _pick_query_tile(S, Dq, Hkh, hkv_cols, value_size, H, itemsize, vmem_limit)
    nq = S // TQ if S % TQ == 0 else 1

    kernel = functools.partial(
        _gmha_kernel, num_head=H, keys_per_head=kph, values_per_head=vph)

    flops = (2 * B * S * Dq * Hkh                       # Q projection
             + 2 * B * nq * S * Dq * hkv_cols           # K|V projection per tile
             + 2 * B * H * S * S * (kph + vph + 1)      # scores + P@V + P@1
             + 2 * B * S * (H * vph) * value_size)      # recombine
    bytes_accessed = (queries.size * (1 + nq) * itemsize
                      + em.size * 2                     # bf16 edge multiplier
                      + B * S * value_size * itemsize
                      + (wqT.size + wkvT.size + wrT.size) * itemsize)
    cost = pl.CostEstimate(flops=int(flops), transcendentals=int(B * H * S * S),
                           bytes_accessed=int(bytes_accessed))

    # TODO(synk): v5e only — if a trace shows exposed em DMA, add
    #             pipeline_mode=pl.Buffered(3) on the em BlockSpec.
    return pl.pallas_call(
        kernel,
        out_shape=jax.ShapeDtypeStruct((B, S, value_size), dtype),
        grid_spec=pltpu.PrefetchScalarGridSpec(
            num_scalar_prefetch=0,
            grid=(B, nq),
            in_specs=[
                pl.BlockSpec((1, TQ, Dq), lambda b, q: (b, q, 0)),       # Q tile
                pl.BlockSpec((1, S, Dq), lambda b, q: (b, 0, 0)),        # full seq
                pl.BlockSpec((1, H, TQ, S), lambda b, q: (b, 0, q, 0)),  # edge mult
                pl.BlockSpec(wqT.shape, lambda b, q: (0, 0)),
                pl.BlockSpec(wkvT.shape, lambda b, q: (0, 0)),
                pl.BlockSpec(wrT.shape, lambda b, q: (0, 0)),
            ],
            out_specs=pl.BlockSpec((1, TQ, value_size), lambda b, q: (b, q, 0)),
        ),
        compiler_params=pltpu.CompilerParams(
            dimension_semantics=("parallel", "parallel"),
            vmem_limit_bytes=vmem_limit),
        cost_estimate=cost,
    )(queries, queries, em, wqT, wkvT, wrT)


# --------------------------------------------------------------------------- #
# Plain-JAX reference (mirrors the PyTorch forward) + self-check harness.      #
# --------------------------------------------------------------------------- #
def ref_forward(queries, edge, params, *, num_head):
    B, S, _ = queries.shape
    H = num_head
    kh = params["wq"].shape[0] // H
    vh = params["wv"].shape[0] // H
    eh = params["we"].shape[0] // H
    scale = float(params["wk"].shape[1]) ** (-0.5)

    Q = (queries @ params["wq"].T).reshape(B, S, H, kh).transpose(0, 2, 1, 3)
    K = (queries @ params["wk"].T).reshape(B, S, H, kh).transpose(0, 2, 3, 1)
    V = (queries @ params["wv"].T).reshape(B, S, H, vh).transpose(0, 2, 1, 3)
    att = Q @ K                                                        # (B,H,S,S)
    ep = (edge @ params["we"].T).reshape(B, S, S, H, eh)
    ep = ep.mean(-1).transpose(0, 3, 1, 2)                             # (B,H,S,S)
    att = att * ep * scale
    att = jax.nn.softmax(att, axis=-1)
    o = (att @ V).transpose(0, 2, 1, 3).reshape(B, S, H * vh)
    return o @ params["wr"].T


if __name__ == "__main__":
    num_head, query_size, edge_dim = 4, 32, 16
    B, S = 2, 8

    key = jax.random.PRNGKey(0)
    ks = jax.random.split(key, 7)

    def xavier(k, shape):           # nn.init.xavier_uniform_
        bound = (6.0 / (shape[0] + shape[1])) ** 0.5
        return jax.random.uniform(k, shape, jnp.float32, -bound, bound)

    def default_linear(k, shape):   # torch default Linear init (~U(+-1/sqrt(fan_in)))
        bound = 1.0 / (shape[1] ** 0.5)
        return jax.random.uniform(k, shape, jnp.float32, -bound, bound)

    params = {
        "wq": xavier(ks[0], (query_size, query_size)),
        "wk": xavier(ks[1], (query_size, query_size)),
        "wv": xavier(ks[2], (query_size, query_size)),
        "we": default_linear(ks[3], (edge_dim, edge_dim)),
        "wr": default_linear(ks[4], (query_size, query_size)),
    }

    queries = jax.random.normal(ks[5], (B, S, query_size), jnp.float32)
    edge_attr = jax.random.normal(ks[6], (B, S, S, edge_dim), jnp.float32)

    out = graph_multi_head_attention(queries, edge_attr, params,
                                     num_head=num_head)
    out = jax.block_until_ready(out)

    ref = ref_forward(queries, edge_attr, params, num_head=num_head)
    assert out.shape == ref.shape == (B, S, query_size)
    # Tolerance accounts for the bf16 edge multiplier and the approximate EUP
    # reciprocal on the softmax denominator.
    if not jnp.allclose(out, ref, atol=2e-2, rtol=2e-2):
        err = float(jnp.max(jnp.abs(out - ref)))
        raise AssertionError(f"Pallas kernel does not match reference (max|d|={err})")

    print("KERNEL_OK")
</pallas_src>

<mosaic_0001>
module attributes {stable_mosaic.version = 11 : i64} {
  func.func @_edge_fold_kernel(%arg0: i32, %arg1: i32, %arg2: memref<1x64x16xf32, #tpu.memory_space<vmem>>, %arg3: memref<4x16xf32, #tpu.memory_space<vmem>>, %arg4: memref<1x4x8x8xbf16, #tpu.memory_space<vmem>>) attributes {dimension_semantics = [#tpu.dimension_semantics<parallel>, #tpu.dimension_semantics<parallel>], iteration_bounds = array<i64: 2, 1>, scalar_prefetch = 0 : i64, scratch_operands = 0 : i64, tpu.core_type = #tpu.core_type<tc>, window_params = [{transform_indices = @transform_0, window_bounds = array<i64: 1, 64, 16>}, {pipeline_mode = #tpu.pipeline_mode<synchronous>, transform_indices = @transform_1, window_bounds = array<i64: 4, 16>}, {transform_indices = @transform_2, window_bounds = array<i64: 1, 4, 8, 8>}]} {
    %c0 = arith.constant 0 : index
    %c0_0 = arith.constant 0 : index
    %0 = vector.load %arg3[%c0, %c0_0] : memref<4x16xf32, #tpu.memory_space<vmem>>, vector<4x16xf32>
    %c0_1 = arith.constant 0 : index
    %c0_2 = arith.constant 0 : index
    %c0_3 = arith.constant 0 : index
    %1 = vector.load %arg2[%c0_1, %c0_2, %c0_3] : memref<1x64x16xf32, #tpu.memory_space<vmem>>, vector<1x8x16xf32>
    %2 = vector.shape_cast %1 : vector<1x8x16xf32> to vector<8x16xf32>
    %cst = arith.constant dense<0.000000e+00> : vector<4x8xf32>
    %3 = tpu.matmul %0, %2, %cst {dimension_numbers = #tpu.dot_dimension_numbers<[1], [1], [0], [0], [0, 0, 1, 0], [], []>} : vector<4x16xf32>, vector<8x16xf32>, vector<4x8xf32> -> vector<4x8xf32>
    %4 = arith.truncf %3 : vector<4x8xf32> to vector<4x8xbf16>
    %c0_4 = arith.constant 0 : index
    %c0_5 = arith.constant 0 : index
    %c0_6 = arith.constant 0 : index
    %c0_7 = arith.constant 0 : index
    %5 = vector.load %arg4[%c0_4, %c0_5, %c0_6, %c0_7] : memref<1x4x8x8xbf16, #tpu.memory_space<vmem>>, vector<1x4x1x8xbf16>
    %6 = vector.shape_cast %5 : vector<1x4x1x8xbf16> to vector<4x8xbf16>
    %7 = vector.shape_cast %4 : vector<4x8xbf16> to vector<1x4x1x8xbf16>
    tpu.vector_store %arg4[%c0_4, %c0_5, %c0_6, %c0_7], %7 {strides = array<i32>} : memref<1x4x8x8xbf16, #tpu.memory_space<vmem>>, vector<1x4x1x8xbf16>,
    %c0_8 = arith.constant 0 : index
    %c8 = arith.constant 8 : index
    %c0_9 = arith.constant 0 : index
    %8 = vector.load %arg2[%c0_8, %c8, %c0_9] : memref<1x64x16xf32, #tpu.memory_space<vmem>>, vector<1x8x16xf32>
    %9 = vector.shape_cast %8 : vector<1x8x16xf32> to vector<8x16xf32>
    %cst_10 = arith.constant dense<0.000000e+00> : vector<4x8xf32>
    %10 = tpu.matmul %0, %9, %cst_10 {dimension_numbers = #tpu.dot_dimension_numbers<[1], [1], [0], [0], [0, 0, 1, 0], [], []>} : vector<4x16xf32>, vector<8x16xf32>, vector<4x8xf32> -> vector<4x8xf32>
    %11 = arith.truncf %10 : vector<4x8xf32> to vector<4x8xbf16>
    %c0_11 = arith.constant 0 : index
    %c0_12 = arith.constant 0 : index
    %c1 = arith.constant 1 : index
    %c0_13 = arith.constant 0 : index
    %12 = vector.load %arg4[%c0_11, %c0_12, %c1, %c0_13] : memref<1x4x8x8xbf16, #tpu.memory_space<vmem>>, vector<1x4x1x8xbf16>
    %13 = vector.shape_cast %12 : vector<1x4x1x8xbf16> to vector<4x8xbf16>
    %14 = vector.shape_cast %11 : vector<4x8xbf16> to vector<1x4x1x8xbf16>
    tpu.vector_store %arg4[%c0_11, %c0_12, %c1, %c0_13], %14 {strides = array<i32>} : memref<1x4x8x8xbf16, #tpu.memory_space<vmem>>, vector<1x4x1x8xbf16>,
    %c0_14 = arith.constant 0 : index
    %c16 = arith.constant 16 : index
    %c0_15 = arith.constant 0 : index
    %15 = vector.load %arg2[%c0_14, %c16, %c0_15] : memref<1x64x16xf32, #tpu.memory_space<vmem>>, vector<1x8x16xf32>
    %16 = vector.shape_cast %15 : vector<1x8x16xf32> to vector<8x16xf32>
    %cst_16 = arith.constant dense<0.000000e+00> : vector<4x8xf32>
    %17 = tpu.matmul %0, %16, %cst_16 {dimension_numbers = #tpu.dot_dimension_numbers<[1], [1], [0], [0], [0, 0, 1, 0], [], []>} : vector<4x16xf32>, vector<8x16xf32>, vector<4x8xf32> -> vector<4x8xf32>
    %18 = arith.truncf %17 : vector<4x8xf32> to vector<4x8xbf16>
    %c0_17 = arith.constant 0 : index
    %c0_18 = arith.constant 0 : index
    %c2 = arith.constant 2 : index
    %c0_19 = arith.constant 0 : index
    %19 = vector.load %arg4[%c0_17, %c0_18, %c2, %c0_19] : memref<1x4x8x8xbf16, #tpu.memory_space<vmem>>, vector<1x4x1x8xbf16>
    %20 = vector.shape_cast %19 : vector<1x4x1x8xbf16> to vector<4x8xbf16>
    %21 = vector.shape_cast %18 : vector<4x8xbf16> to vector<1x4x1x8xbf16>
    tpu.vector_store %arg4[%c0_17, %c0_18, %c2, %c0_19], %21 {strides = array<i32>} : memref<1x4x8x8xbf16, #tpu.memory_space<vmem>>, vector<1x4x1x8xbf16>,
    %c0_20 = arith.constant 0 : index
    %c24 = arith.constant 24 : index
    %c0_21 = arith.constant 0 : index
    %22 = vector.load %arg2[%c0_20, %c24, %c0_21] : memref<1x64x16xf32, #tpu.memory_space<vmem>>, vector<1x8x16xf32>
    %23 = vector.shape_cast %22 : vector<1x8x16xf32> to vector<8x16xf32>
    %cst_22 = arith.constant dense<0.000000e+00> : vector<4x8xf32>
    %24 = tpu.matmul %0, %23, %cst_22 {dimension_numbers = #tpu.dot_dimension_numbers<[1], [1], [0], [0], [0, 0, 1, 0], [], []>} : vector<4x16xf32>, vector<8x16xf32>, vector<4x8xf32> -> vector<4x8xf32>
    %25 = arith.truncf %24 : vector<4x8xf32> to vector<4x8xbf16>
    %c0_23 = arith.constant 0 : index
    %c0_24 = arith.constant 0 : index
    %c3 = arith.constant 3 : index
    %c0_25 = arith.constant 0 : index
    %26 = vector.load %arg4[%c0_23, %c0_24, %c3, %c0_25] : memref<1x4x8x8xbf16, #tpu.memory_space<vmem>>, vector<1x4x1x8xbf16>
    %27 = vector.shape_cast %26 : vector<1x4x1x8xbf16> to vector<4x8xbf16>
    %28 = vector.shape_cast %25 : vector<4x8xbf16> to vector<1x4x1x8xbf16>
    tpu.vector_store %arg4[%c0_23, %c0_24, %c3, %c0_25], %28 {strides = array<i32>} : memref<1x4x8x8xbf16, #tpu.memory_space<vmem>>, vector<1x4x1x8xbf16>,
    %c0_26 = arith.constant 0 : index
    %c32 = arith.constant 32 : index
    %c0_27 = arith.constant 0 : index
    %29 = vector.load %arg2[%c0_26, %c32, %c0_27] : memref<1x64x16xf32, #tpu.memory_space<vmem>>, vector<1x8x16xf32>
    %30 = vector.shape_cast %29 : vector<1x8x16xf32> to vector<8x16xf32>
    %cst_28 = arith.constant dense<0.000000e+00> : vector<4x8xf32>
    %31 = tpu.matmul %0, %30, %cst_28 {dimension_numbers = #tpu.dot_dimension_numbers<[1], [1], [0], [0], [0, 0, 1, 0], [], []>} : vector<4x16xf32>, vector<8x16xf32>, vector<4x8xf32> -> vector<4x8xf32>
    %32 = arith.truncf %31 : vector<4x8xf32> to vector<4x8xbf16>
    %c0_29 = arith.constant 0 : index
    %c0_30 = arith.constant 0 : index
    %c4 = arith.constant 4 : index
    %c0_31 = arith.constant 0 : index
    %33 = vector.load %arg4[%c0_29, %c0_30, %c4, %c0_31] : memref<1x4x8x8xbf16, #tpu.memory_space<vmem>>, vector<1x4x1x8xbf16>
    %34 = vector.shape_cast %33 : vector<1x4x1x8xbf16> to vector<4x8xbf16>
    %35 = vector.shape_cast %32 : vector<4x8xbf16> to vector<1x4x1x8xbf16>
    tpu.vector_store %arg4[%c0_29, %c0_30, %c4, %c0_31], %35 {strides = array<i32>} : memref<1x4x8x8xbf16, #tpu.memory_space<vmem>>, vector<1x4x1x8xbf16>,
    %c0_32 = arith.constant 0 : index
    %c40 = arith.constant 40 : index
    %c0_33 = arith.constant 0 : index
    %36 = vector.load %arg2[%c0_32, %c40, %c0_33] : memref<1x64x16xf32, #tpu.memory_space<vmem>>, vector<1x8x16xf32>
    %37 = vector.shape_cast %36 : vector<1x8x16xf32> to vector<8x16xf32>
    %cst_34 = arith.constant dense<0.000000e+00> : vector<4x8xf32>
    %38 = tpu.matmul %0, %37, %cst_34 {dimension_numbers = #tpu.dot_dimension_numbers<[1], [1], [0], [0], [0, 0, 1, 0], [], []>} : vector<4x16xf32>, vector<8x16xf32>, vector<4x8xf32> -> vector<4x8xf32>
    %39 = arith.truncf %38 : vector<4x8xf32> to vector<4x8xbf16>
    %c0_35 = arith.constant 0 : index
    %c0_36 = arith.constant 0 : index
    %c5 = arith.constant 5 : index
    %c0_37 = arith.constant 0 : index
    %40 = vector.load %arg4[%c0_35, %c0_36, %c5, %c0_37] : memref<1x4x8x8xbf16, #tpu.memory_space<vmem>>, vector<1x4x1x8xbf16>
    %41 = vector.shape_cast %40 : vector<1x4x1x8xbf16> to vector<4x8xbf16>
    %42 = vector.shape_cast %39 : vector<4x8xbf16> to vector<1x4x1x8xbf16>
    tpu.vector_store %arg4[%c0_35, %c0_36, %c5, %c0_37], %42 {strides = array<i32>} : memref<1x4x8x8xbf16, #tpu.memory_space<vmem>>, vector<1x4x1x8xbf16>,
    %c0_38 = arith.constant 0 : index
    %c48 = arith.constant 48 : index
    %c0_39 = arith.constant 0 : index
    %43 = vector.load %arg2[%c0_38, %c48, %c0_39] : memref<1x64x16xf32, #tpu.memory_space<vmem>>, vector<1x8x16xf32>
    %44 = vector.shape_cast %43 : vector<1x8x16xf32> to vector<8x16xf32>
    %cst_40 = arith.constant dense<0.000000e+00> : vector<4x8xf32>
    %45 = tpu.matmul %0, %44, %cst_40 {dimension_numbers = #tpu.dot_dimension_numbers<[1], [1], [0], [0], [0, 0, 1, 0], [], []>} : vector<4x16xf32>, vector<8x16xf32>, vector<4x8xf32> -> vector<4x8xf32>
    %46 = arith.truncf %45 : vector<4x8xf32> to vector<4x8xbf16>
    %c0_41 = arith.constant 0 : index
    %c0_42 = arith.constant 0 : index
    %c6 = arith.constant 6 : index
    %c0_43 = arith.constant 0 : index
    %47 = vector.load %arg4[%c0_41, %c0_42, %c6, %c0_43] : memref<1x4x8x8xbf16, #tpu.memory_space<vmem>>, vector<1x4x1x8xbf16>
    %48 = vector.shape_cast %47 : vector<1x4x1x8xbf16> to vector<4x8xbf16>
    %49 = vector.shape_cast %46 : vector<4x8xbf16> to vector<1x4x1x8xbf16>
    tpu.vector_store %arg4[%c0_41, %c0_42, %c6, %c0_43], %49 {strides = array<i32>} : memref<1x4x8x8xbf16, #tpu.memory_space<vmem>>, vector<1x4x1x8xbf16>,
    %c0_44 = arith.constant 0 : index
    %c56 = arith.constant 56 : index
    %c0_45 = arith.constant 0 : index
    %50 = vector.load %arg2[%c0_44, %c56, %c0_45] : memref<1x64x16xf32, #tpu.memory_space<vmem>>, vector<1x8x16xf32>
    %51 = vector.shape_cast %50 : vector<1x8x16xf32> to vector<8x16xf32>
    %cst_46 = arith.constant dense<0.000000e+00> : vector<4x8xf32>
    %52 = tpu.matmul %0, %51, %cst_46 {dimension_numbers = #tpu.dot_dimension_numbers<[1], [1], [0], [0], [0, 0, 1, 0], [], []>} : vector<4x16xf32>, vector<8x16xf32>, vector<4x8xf32> -> vector<4x8xf32>
    %53 = arith.truncf %52 : vector<4x8xf32> to vector<4x8xbf16>
    %c0_47 = arith.constant 0 : index
    %c0_48 = arith.constant 0 : index
    %c7 = arith.constant 7 : index
    %c0_49 = arith.constant 0 : index
    %54 = vector.load %arg4[%c0_47, %c0_48, %c7, %c0_49] : memref<1x4x8x8xbf16, #tpu.memory_space<vmem>>, vector<1x4x1x8xbf16>
    %55 = vector.shape_cast %54 : vector<1x4x1x8xbf16> to vector<4x8xbf16>
    %56 = vector.shape_cast %53 : vector<4x8xbf16> to vector<1x4x1x8xbf16>
    tpu.vector_store %arg4[%c0_47, %c0_48, %c7, %c0_49], %56 {strides = array<i32>} : memref<1x4x8x8xbf16, #tpu.memory_space<vmem>>, vector<1x4x1x8xbf16>,
    return
  }
  func.func @transform_0(%arg0: i32, %arg1: i32) -> (i32, i32, i32) {
    %c0_i32 = arith.constant 0 : i32
    %c0_i32_0 = arith.constant 0 : i32
    return %arg0, %arg1, %c0_i32 : i32, i32, i32
  }
  func.func @transform_1(%arg0: i32, %arg1: i32) -> (i32, i32) {
    %c0_i32 = arith.constant 0 : i32
    %c0_i32_0 = arith.constant 0 : i32
    %c0_i32_1 = arith.constant 0 : i32
    return %c0_i32, %c0_i32_0 : i32, i32
  }
  func.func @transform_2(%arg0: i32, %arg1: i32) -> (i32, i32, i32, i32) {
    %c0_i32 = arith.constant 0 : i32
    %c0_i32_0 = arith.constant 0 : i32
    %c0_i32_1 = arith.constant 0 : i32
    return %arg0, %c0_i32, %arg1, %c0_i32_0 : i32, i32, i32, i32
  }
}

</mosaic_0001>

<llo_original>
// kernel: tpu_custom_call.1
$region0: #{tpu_custom_call.1}
  #allocation0 [shape = 'u32[]', space=smem, size = 0x4, offset = 0x4, fixed_abs, tag = 'smem constant byte address 0x4 - core index']
  #allocation1 [shape = 'u32[72,128]{1,0:T(1,128)}', space=vmem, size = 0x9000, scoped, tag = 'internal scratch']
  %s0 = inlined_call_operand.vmem [shape: f32[2,64,16], index: 0, kind: input, shape index: {}]
  %s1 = inlined_call_operand.vmem [shape: f32[4,16], index: 1, kind: input, shape index: {}]
  %s2 = inlined_call_operand.hbm [shape: bf16[2,4,8,8], index: 2, kind: output, shape index: {}]
  %s3 = sld [smem:[#allocation0]]
  $region41: #{tpu_custom_call.1} parent=0
    _
  %s5 = ssub.s32 1, %s3
  %s6 = scalar_select 0, %s5, %s3
  $region1: #{tpu_custom_call.1} parent=0
    #allocation2 [shape = 'u8[16384]{0}', space=vmem, size = 0x4000, scoped, tag = 'output window, operand 0']
    #allocation3 [shape = 's32[2]{0}', space=sflag, size = 0x8, scoped, tag = 'scoped memory for tpu_custom_call.1']
    %7 = vsyncpa [#allocation3], 0
    %s8 = scalar_lea.sflag [#allocation3], 1
    %9 = vsyncpa %s8, 0
    loop: start=0, step=1, limit=4
    $region2: #{tpu_custom_call.1} parent=1 // loop_pre_header
      _
    $region3: #{tpu_custom_call.1} parent=1 // loop_header
      %s11 = sphi 0, %s15
      %p12 = scmp.ge.s32.totalorder %s11, 4
      %s18 = sphi 0, %s30
      %s19 = sphi 0, %s26
      %s20 = sphi 0, %s18
      %s21 = sphi 0, %s19
      %s22 = sphi 0, %s20
      %s23 = sphi 0, %s21
      %s35 = sphi 0, %s37
      %s38 = sphi 0, %s35
      %s39 = sphi 0, %s38
      %s55 = sphi 0, %s39
      %s59 = sphi 0, %s59
      %s61 = sphi 0, %s59
      %s62 = sphi 0, %s61
      %s76 = sphi 0, %s62
      %s84 = sphi 0, %s86
      %s87 = sphi 0, %s84
      %s88 = sphi 0, %s87
      %s104 = sphi 0, %s88
    $region4: #{tpu_custom_call.1} parent=1 // loop_header_branch
      %14 = sbr.rel (%p12) target = $region8
    $region5: #{tpu_custom_call.1} parent=1 // loop_body
      %s16 = ssub.s32 %s11, 1
      %s17 = ssub.s32 %s11, 2
      %s24 = sadd.s32 1, %s19
      %p25 = scmp.ge.s32.totalorder %s24, 1
      %s26 = scalar_select %p25, 0, %s24
      %s27 = sadd.s32 1, %s18
      %s28 = scalar_select %p25, %s27, %s18
      %p29 = scmp.ge.s32.totalorder %s28, 2
      %s30 = scalar_select %p29, 0, %s28
      %s31 = ssub.s32 %s18, %s30
      %s32 = ssub.s32 %s19, %s26
      %s33 = sor.u32 %s31, %s32
      %p34 = scmp.eq.s32.totalorder %s33, 0
      %s36 = sadd.s32 %s35, 1
      %s37 = scalar_select %p34, %s35, %s36
      %p40 = pneg %p34
      %p41 = scmp.eq.s32.totalorder %s11, 1
      %p42 = por %p40, %p41
      %p43 = scmp.ne.s32.totalorder %s35, %s38
      %p44 = scmp.eq.s32.totalorder %s11, 0
      %p45 = por %p43, %p44
      %p46 = scmp.ne.s32.totalorder %s35, %s38
      %p47 = scmp.eq.s32.totalorder %s16, 1
      %p48 = por %p46, %p47
      %p49 = scmp.ne.s32.totalorder %s38, %s39
      %p50 = scmp.eq.s32.totalorder %s16, 0
      %p51 = por %p49, %p50
      %p52 = scmp.ne.s32.totalorder %s38, %s39
      %p53 = scmp.eq.s32.totalorder %s17, 1
      %p54 = por %p52, %p53
      %p56 = scmp.ne.s32.totalorder %s39, %s55
      %p57 = scmp.eq.s32.totalorder %s17, 0
      %p58 = por %p56, %p57
      %s60 = sadd.s32 %s59, 1
      %p63 = scmp.eq.s32.totalorder %s11, 1
      %p64 = scmp.ne.s32.totalorder %s59, %s61
      %p65 = scmp.eq.s32.totalorder %s11, 0
      %p66 = por %p64, %p65
      %p67 = scmp.ne.s32.totalorder %s59, %s61
      %p68 = scmp.eq.s32.totalorder %s16, 1
      %p69 = por %p67, %p68
      %p70 = scmp.ne.s32.totalorder %s61, %s62
      %p71 = scmp.eq.s32.totalorder %s16, 0
      %p72 = por %p70, %p71
      %p73 = scmp.ne.s32.totalorder %s61, %s62
      %p74 = scmp.eq.s32.totalorder %s17, 1
      %p75 = por %p73, %p74
      %p77 = scmp.ne.s32.totalorder %s62, %s76
      %p78 = scmp.eq.s32.totalorder %s17, 0
      %p79 = por %p77, %p78
      %s80 = ssub.s32 %s18, %s30
      %s81 = ssub.s32 %s19, %s26
      %s82 = sor.u32 %s80, %s81
      %p83 = scmp.eq.s32.totalorder %s82, 0
      %s85 = sadd.s32 %s84, 1
      %s86 = scalar_select %p83, %s84, %s85
      %p89 = pneg %p83
      %p90 = scmp.eq.s32.totalorder %s11, 1
      %p91 = por %p89, %p90
      %p92 = scmp.ne.s32.totalorder %s84, %s87
      %p93 = scmp.eq.s32.totalorder %s11, 0
      %p94 = por %p92, %p93
      %p95 = scmp.ne.s32.totalorder %s84, %s87
      %p96 = scmp.eq.s32.totalorder %s16, 1
      %p97 = por %p95, %p96
      %p98 = scmp.ne.s32.totalorder %s87, %s88
      %p99 = scmp.eq.s32.totalorder %s16, 0
      %p100 = por %p98, %p99
      %p101 = scmp.ne.s32.totalorder %s87, %s88
      %p102 = scmp.eq.s32.totalorder %s17, 1
      %p103 = por %p101, %p102
      %p105 = scmp.ne.s32.totalorder %s88, %s104
      %p106 = scmp.eq.s32.totalorder %s17, 0
      %p107 = por %p105, %p106
      %p108 = scmp.le.s32.totalorder 1, %s11
      %p109 = scmp.lt.s32.totalorder %s11, 3
      %p110 = pnand %p108, %p109
      %p111 = pneg %p110
      // Predicated region
      $region9: #{tpu_custom_call.1} parent=5 // pred_check
        _
      $region10: #{tpu_custom_call.1} parent=5 // pred_check_branch
        %113 = sbr.rel (%p110) target = $region12
      $region11: #{tpu_custom_call.1} parent=5 // pred_region
        %s114 = ssub.s32 %s11, 1
        // Predicated region
        $region13: #{tpu_custom_call.1} parent=11 // pred_check
          %p115 = pneg %p72
        $region14: #{tpu_custom_call.1} parent=11 // pred_check_branch
          %117 = sbr.rel (%p115) target = $region16
        $region15: #{tpu_custom_call.1} parent=11 // pred_region
          _
        $region16: #{tpu_custom_call.1} parent=11 // pred_fallthru
          _
      $region12: #{tpu_custom_call.1} parent=5 // pred_fallthru
        _
      %p118 = scmp.lt.s32.totalorder %s11, 2
      // Predicated region
      $region17: #{tpu_custom_call.1} parent=5 // pred_check
        %p119 = pneg %p118
      $region18: #{tpu_custom_call.1} parent=5 // pred_check_branch
        %121 = sbr.rel (%p119) target = $region20
      $region19: #{tpu_custom_call.1} parent=5 // pred_region
        // Predicated region
        $region21: #{tpu_custom_call.1} parent=19 // pred_check
          %p122 = pneg %p45
        $region22: #{tpu_custom_call.1} parent=19 // pred_check_branch
          %124 = sbr.rel (%p122) target = $region24
        $region23: #{tpu_custom_call.1} parent=19 // pred_region
          %s125 = smul.u32 8, %s19
          %p126 = scmp.lt.s32.totalorder %s18, 1
          %s127 = scalar_select %p126, %s18, 1
          %p128 = scmp.lt.s32.totalorder %s125, 7
          %s129 = scalar_select %p128, %s125, 7
          %s130 = smul.addr %s127, 8
          %s131 = sadd.s32 %s129, %s130
          %s132 = smul.addr %s131, 8
          %s133 = scalar_lea.vmem %s0, %s132
          %s134 = smul.u32 8, %s19
        $region24: #{tpu_custom_call.1} parent=19 // pred_fallthru
          _
      $region20: #{tpu_custom_call.1} parent=5 // pred_fallthru
        _
      %p135 = scmp.le.s32.totalorder 1, %s11
      %p136 = scmp.lt.s32.totalorder %s11, 3
      %p137 = pnand %p135, %p136
      %p138 = pneg %p137
      // Predicated region
      $region25: #{tpu_custom_call.1} parent=5 // pred_check
        _
      $region26: #{tpu_custom_call.1} parent=5 // pred_check_branch
        %140 = sbr.rel (%p137) target = $region28
      $region27: #{tpu_custom_call.1} parent=5 // pred_region
        %s141 = ssub.s32 %s11, 1
        %s142 = smul.u32 8, %s21
        %p143 = scmp.lt.s32.totalorder %s20, 1
        %s144 = scalar_select %p143, %s20, 1
        %p145 = scmp.lt.s32.totalorder %s142, 7
        %s146 = scalar_select %p145, %s142, 7
        %s147 = smul.addr %s144, 8
        %s148 = sadd.s32 %s146, %s147
        %s149 = smul.addr %s148, 8
        %s150 = scalar_lea.vmem %s0, %s149
        %p151 = pneg %p51
        %p152 = pneg %p48
        %p153 = pneg %p72
        %p154 = pneg %p69
        %p155 = pneg %p100
        %p156 = pneg %p97
        %s157 = sand.u32 %s87, 1
        %s158 = scalar_lea.sflag [#allocation3], %s157
        %s159 = sand.u32 %s87, 1
        %s160 = smul.addr %s159, 16
        %s161 = scalar_lea.vmem [#allocation2], %s160
        %s162 = smul.u32 8, %s21
        %p163 = scmp.lt.s32.totalorder %s20, 1
        %s164 = scalar_select %p163, %s20, 1
        %p165 = scmp.lt.s32.totalorder %s162, 7
        %s166 = scalar_select %p165, %s162, 7
        %s167 = smul.addr %s164, 8
        %s168 = sadd.s32 %s166, %s167
        %s169 = smul.addr %s168, 8
        %s170 = scalar_lea.vmem %s0, %s169
        %s171 = smul.u32 8, %s21
        %v172 = vld [vmem:[%s1] sm:$0xf]
        %v173 = vld [vmem:[%s170] sm:$0xff]
        %vm174 = vcmask 130048
        %v176 = vsel %vm174, %v172, 0
        %v179 = vsel %vm174, %v173, 0
        %181 = vmatpush.xpose.msra.mxu0 0.0
        %182 = vmatpush.xpose.msra.mxu0 0.0
        %183 = vmatpush.xpose.msra.mxu0 0.0
        %184 = vmatpush.xpose.msra.mxu0 0.0
        %185 = vmatpush.xpose.msra.mxu0 0.0
        %186 = vmatpush.xpose.msra.mxu0 0.0
        %187 = vmatpush.xpose.msra.mxu0 0.0
        %188 = vmatpush.xpose.msra.mxu0 0.0
        %189 = vmatpush.xpose.msra.mxu0 0.0
        %190 = vmatpush.xpose.msra.mxu0 0.0
        %191 = vmatpush.xpose.msra.mxu0 0.0
        %192 = vmatpush.xpose.msra.mxu0 0.0
        %193 = vmatpush.xpose.msra.mxu0 0.0
        %194 = vmatpush.xpose.msra.mxu0 0.0
        %195 = vmatpush.xpose.msra.mxu0 0.0
        %196 = vmatpush.xpose.msra.mxu0 %v179
        %197 = vmatmul.f32.gmra.mxu0 %v176
        %v198 = vpop.f32.mrf.mxu0
        %v199 = vadd.f32 0.0, %v198
        %200 = vdwg.mxu0
        %v201 = vpack.c.bf16 %v199, %v199
        %v203 = vrot.slane %v201, 3
        %vm204 = vcmask 1040384
        %v207 = vsel %vm204, %v201, %v203
        %vm209 = vcmask 1041409
        %v210 = vsel %vm209, %v201, %v203
        %v212 = vrot.slane %v210, 1
        %v213 = vunpack.i.l.s16 %v207
        %v214 = vunpack.i.h.s16 %v207
        %v215 = vunpack.i.l.s16 %v212
        %v216 = vunpack.i.h.s16 %v212
        %v217 = vpack.i.b16 %v213, %v213
        %v218 = vpack.i.b16 %v214, %v214
        %v219 = vpack.i.b16 %v215, %v215
        %v220 = vpack.i.b16 %v216, %v216
        %v222 = vunpack.c.l.s4 286326784
        %v223 = vunpack.c.0.s8 %v222
        %v224 = vperm.slane %v217, %v223
        %v226 = vunpack.c.l.s4 286326784
        %v227 = vunpack.c.0.s8 %v226
        %v228 = vperm.slane %v218, %v227
        %v230 = vunpack.c.l.s4 286326784
        %v231 = vunpack.c.0.s8 %v230
        %v232 = vperm.slane %v219, %v231
        %v234 = vunpack.c.l.s4 286326784
        %v235 = vunpack.c.0.s8 %v234
        %v236 = vperm.slane %v220, %v235
        %vm241 = vcmask 57344
        %vm242 = vsmask.f32 256
        %vm243 = vmand %vm241, %vm242
        %v244 = vld [vmem:[%s161] sm:$0x1]
        %v245 = vsel %vm243, %v224, %v244
        %246 = vst [vmem:[%s161] sm:$0x1] %v245
        %v247 = vld [vmem:[%s161 + $0x4] sm:$0x1]
        %v248 = vsel %vm243, %v228, %v247
        %249 = vst [vmem:[%s161 + $0x4] sm:$0x1] %v248
        %v250 = vld [vmem:[%s161 + $0x8] sm:$0x1]
        %v251 = vsel %vm243, %v232, %v250
        %252 = vst [vmem:[%s161 + $0x8] sm:$0x1] %v251
        %v253 = vld [vmem:[%s161 + $0xc] sm:$0x1]
        %v254 = vsel %vm243, %v236, %v253
        %255 = vst [vmem:[%s161 + $0xc] sm:$0x1] %v254
        %v256 = vld [vmem:[%s170 + $0x8] sm:$0xff]
        %v258 = vsel %vm174, %v256, 0
        %260 = vmatpush.xpose.msra.mxu0 0.0
        %261 = vmatpush.xpose.msra.mxu0 0.0
        %262 = vmatpush.xpose.msra.mxu0 0.0
        %263 = vmatpush.xpose.msra.mxu0 0.0
        %264 = vmatpush.xpose.msra.mxu0 0.0
        %265 = vmatpush.xpose.msra.mxu0 0.0
        %266 = vmatpush.xpose.msra.mxu0 0.0
        %267 = vmatpush.xpose.msra.mxu0 0.0
        %268 = vmatpush.xpose.msra.mxu0 0.0
        %269 = vmatpush.xpose.msra.mxu0 0.0
        %270 = vmatpush.xpose.msra.mxu0 0.0
        %271 = vmatpush.xpose.msra.mxu0 0.0
        %272 = vmatpush.xpose.msra.mxu0 0.0
        %273 = vmatpush.xpose.msra.mxu0 0.0
        %274 = vmatpush.xpose.msra.mxu0 0.0
        %275 = vmatpush.xpose.msra.mxu0 %v258
        %276 = vmatmul.f32.gmra.mxu0 %v176
        %v277 = vpop.f32.mrf.mxu0
        %v278 = vadd.f32 0.0, %v277
        %279 = vdwg.mxu0
        %v280 = vpack.c.bf16 %v278, %v278
        %v282 = vrot.slane %v280, 3
        %v285 = vsel %vm204, %v280, %v282
        %v287 = vsel %vm209, %v280, %v282
        %v289 = vrot.slane %v287, 1
        %v290 = vunpack.i.l.s16 %v285
        %v291 = vunpack.i.h.s16 %v285
        %v292 = vunpack.i.l.s16 %v289
        %v293 = vunpack.i.h.s16 %v289
        %v294 = vpack.i.b16 %v290, %v290
        %v295 = vpack.i.b16 %v291, %v291
        %v296 = vpack.i.b16 %v292, %v292
        %v297 = vpack.i.b16 %v293, %v293
        %v299 = vunpack.c.l.s4 286326784
        %v300 = vunpack.c.0.s8 %v299
        %v301 = vperm.slane %v294, %v300
        %v303 = vunpack.c.l.s4 286326784
        %v304 = vunpack.c.0.s8 %v303
        %v305 = vperm.slane %v295, %v304
        %v307 = vunpack.c.l.s4 286326784
        %v308 = vunpack.c.0.s8 %v307
        %v309 = vperm.slane %v296, %v308
        %v311 = vunpack.c.l.s4 286326784
        %v312 = vunpack.c.0.s8 %v311
        %v313 = vperm.slane %v297, %v312
        %vm318 = vsmask.f32 7938
        %vm319 = vmand %vm241, %vm318
        %v320 = vld [vmem:[%s161] sm:$0x1]
        %v321 = vsel %vm319, %v301, %v320
        %322 = vst [vmem:[%s161] sm:$0x1] %v321
        %v323 = vld [vmem:[%s161 + $0x4] sm:$0x1]
        %v324 = vsel %vm319, %v305, %v323
        %325 = vst [vmem:[%s161 + $0x4] sm:$0x1] %v324
        %v326 = vld [vmem:[%s161 + $0x8] sm:$0x1]
        %v327 = vsel %vm319, %v309, %v326
        %328 = vst [vmem:[%s161 + $0x8] sm:$0x1] %v327
        %v329 = vld [vmem:[%s161 + $0xc] sm:$0x1]
        %v330 = vsel %vm319, %v313, %v329
        %331 = vst [vmem:[%s161 + $0xc] sm:$0x1] %v330
        %v332 = vld [vmem:[%s170 + $0x10] sm:$0xff]
        %v334 = vsel %vm174, %v332, 0
        %336 = vmatpush.xpose.msra.mxu0 0.0
        %337 = vmatpush.xpose.msra.mxu0 0.0
        %338 = vmatpush.xpose.msra.mxu0 0.0
        %339 = vmatpush.xpose.msra.mxu0 0.0
        %340 = vmatpush.xpose.msra.mxu0 0.0
        %341 = vmatpush.xpose.msra.mxu0 0.0
        %342 = vmatpush.xpose.msra.mxu0 0.0
        %343 = vmatpush.xpose.msra.mxu0 0.0
        %344 = vmatpush.xpose.msra.mxu0 0.0
        %345 = vmatpush.xpose.msra.mxu0 0.0
        %346 = vmatpush.xpose.msra.mxu0 0.0
        %347 = vmatpush.xpose.msra.mxu0 0.0
        %348 = vmatpush.xpose.msra.mxu0 0.0
        %349 = vmatpush.xpose.msra.mxu0 0.0
        %350 = vmatpush.xpose.msra.mxu0 0.0
        %351 = vmatpush.xpose.msra.mxu0 %v334
        %352 = vmatmul.f32.gmra.mxu0 %v176
        %v353 = vpop.f32.mrf.mxu0
        %v354 = vadd.f32 0.0, %v353
        %355 = vdwg.mxu0
        %v356 = vpack.c.bf16 %v354, %v354
        %v358 = vrot.slane %v356, 3
        %v361 = vsel %vm204, %v356, %v358
        %v363 = vsel %vm209, %v356, %v358
        %v365 = vrot.slane %v363, 1
        %v366 = vunpack.i.l.s16 %v361
        %v367 = vunpack.i.h.s16 %v361
        %v368 = vunpack.i.l.s16 %v365
        %v369 = vunpack.i.h.s16 %v365
        %v370 = vpack.i.b16 %v366, %v366
        %v371 = vpack.i.b16 %v367, %v367
        %v372 = vpack.i.b16 %v368, %v368
        %v373 = vpack.i.b16 %v369, %v369
        %v375 = vunpack.c.l.s4 286326784
        %v376 = vunpack.c.0.s8 %v375
        %v377 = vperm.slane %v370, %v376
        %v379 = vunpack.c.l.s4 286326784
        %v380 = vunpack.c.0.s8 %v379
        %v381 = vperm.slane %v371, %v380
        %v383 = vunpack.c.l.s4 286326784
        %v384 = vunpack.c.0.s8 %v383
        %v385 = vperm.slane %v372, %v384
        %v387 = vunpack.c.l.s4 286326784
        %v388 = vunpack.c.0.s8 %v387
        %v389 = vperm.slane %v373, %v388
        %vm394 = vcmask 58369
        %vm395 = vsmask.f32 1280
        %vm396 = vmand %vm394, %vm395
        %v397 = vld [vmem:[%s161] sm:$0x2]
        %v398 = vsel %vm396, %v377, %v397
        %399 = vst [vmem:[%s161] sm:$0x2] %v398
        %v400 = vld [vmem:[%s161 + $0x4] sm:$0x2]
        %v401 = vsel %vm396, %v381, %v400
        %402 = vst [vmem:[%s161 + $0x4] sm:$0x2] %v401
        %v403 = vld [vmem:[%s161 + $0x8] sm:$0x2]
        %v404 = vsel %vm396, %v385, %v403
        %405 = vst [vmem:[%s161 + $0x8] sm:$0x2] %v404
        %v406 = vld [vmem:[%s161 + $0xc] sm:$0x2]
        %v407 = vsel %vm396, %v389, %v406
        %408 = vst [vmem:[%s161 + $0xc] sm:$0x2] %v407
        %v409 = vld [vmem:[%s170 + $0x18] sm:$0xff]
        %v411 = vsel %vm174, %v409, 0
        %413 = vmatpush.xpose.msra.mxu0 0.0
        %414 = vmatpush.xpose.msra.mxu0 0.0
        %415 = vmatpush.xpose.msra.mxu0 0.0
        %416 = vmatpush.xpose.msra.mxu0 0.0
        %417 = vmatpush.xpose.msra.mxu0 0.0
        %418 = vmatpush.xpose.msra.mxu0 0.0
        %419 = vmatpush.xpose.msra.mxu0 0.0
        %420 = vmatpush.xpose.msra.mxu0 0.0
        %421 = vmatpush.xpose.msra.mxu0 0.0
        %422 = vmatpush.xpose.msra.mxu0 0.0
        %423 = vmatpush.xpose.msra.mxu0 0.0
        %424 = vmatpush.xpose.msra.mxu0 0.0
        %425 = vmatpush.xpose.msra.mxu0 0.0
        %426 = vmatpush.xpose.msra.mxu0 0.0
        %427 = vmatpush.xpose.msra.mxu0 0.0
        %428 = vmatpush.xpose.msra.mxu0 %v411
        %429 = vmatmul.f32.gmra.mxu0 %v176
        %v430 = vpop.f32.mrf.mxu0
        %v431 = vadd.f32 0.0, %v430
        %432 = vdwg.mxu0
        %v433 = vpack.c.bf16 %v431, %v431
        %v435 = vrot.slane %v433, 3
        %v438 = vsel %vm204, %v433, %v435
        %v440 = vsel %vm209, %v433, %v435
        %v442 = vrot.slane %v440, 1
        %v443 = vunpack.i.l.s16 %v438
        %v444 = vunpack.i.h.s16 %v438
        %v445 = vunpack.i.l.s16 %v442
        %v446 = vunpack.i.h.s16 %v442
        %v447 = vpack.i.b16 %v443, %v443
        %v448 = vpack.i.b16 %v444, %v444
        %v449 = vpack.i.b16 %v445, %v445
        %v450 = vpack.i.b16 %v446, %v446
        %v452 = vunpack.c.l.s4 286326784
        %v453 = vunpack.c.0.s8 %v452
        %v454 = vperm.slane %v447, %v453
        %v456 = vunpack.c.l.s4 286326784
        %v457 = vunpack.c.0.s8 %v456
        %v458 = vperm.slane %v448, %v457
        %v460 = vunpack.c.l.s4 286326784
        %v461 = vunpack.c.0.s8 %v460
        %v462 = vperm.slane %v449, %v461
        %v464 = vunpack.c.l.s4 286326784
        %v465 = vunpack.c.0.s8 %v464
        %v466 = vperm.slane %v450, %v465
        %vm471 = vsmask.f32 7942
        %vm472 = vmand %vm394, %vm471
        %v473 = vld [vmem:[%s161] sm:$0x2]
        %v474 = vsel %vm472, %v454, %v473
        %475 = vst [vmem:[%s161] sm:$0x2] %v474
        %v476 = vld [vmem:[%s161 + $0x4] sm:$0x2]
        %v477 = vsel %vm472, %v458, %v476
        %478 = vst [vmem:[%s161 + $0x4] sm:$0x2] %v477
        %v479 = vld [vmem:[%s161 + $0x8] sm:$0x2]
        %v480 = vsel %vm472, %v462, %v479
        %481 = vst [vmem:[%s161 + $0x8] sm:$0x2] %v480
        %v482 = vld [vmem:[%s161 + $0xc] sm:$0x2]
        %v483 = vsel %vm472, %v466, %v482
        %484 = vst [vmem:[%s161 + $0xc] sm:$0x2] %v483
        %v485 = vld [vmem:[%s170 + $0x20] sm:$0xff]
        %v487 = vsel %vm174, %v485, 0
        %489 = vmatpush.xpose.msra.mxu0 0.0
        %490 = vmatpush.xpose.msra.mxu0 0.0
        %491 = vmatpush.xpose.msra.mxu0 0.0
        %492 = vmatpush.xpose.msra.mxu0 0.0
        %493 = vmatpush.xpose.msra.mxu0 0.0
        %494 = vmatpush.xpose.msra.mxu0 0.0
        %495 = vmatpush.xpose.msra.mxu0 0.0
        %496 = vmatpush.xpose.msra.mxu0 0.0
        %497 = vmatpush.xpose.msra.mxu0 0.0
        %498 = vmatpush.xpose.msra.mxu0 0.0
        %499 = vmatpush.xpose.msra.mxu0 0.0
        %500 = vmatpush.xpose.msra.mxu0 0.0
        %501 = vmatpush.xpose.msra.mxu0 0.0
        %502 = vmatpush.xpose.msra.mxu0 0.0
        %503 = vmatpush.xpose.msra.mxu0 0.0
        %504 = vmatpush.xpose.msra.mxu0 %v487
        %505 = vmatmul.f32.gmra.mxu0 %v176
        %v506 = vpop.f32.mrf.mxu0
        %v507 = vadd.f32 0.0, %v506
        %508 = vdwg.mxu0
        %v509 = vpack.c.bf16 %v507, %v507
        %v511 = vrot.slane %v509, 3
        %v514 = vsel %vm204, %v509, %v511
        %v516 = vsel %vm209, %v509, %v511
        %v518 = vrot.slane %v516, 1
        %v519 = vunpack.i.l.s16 %v514
        %v520 = vunpack.i.h.s16 %v514
        %v521 = vunpack.i.l.s16 %v518
        %v522 = vunpack.i.h.s16 %v518
        %v523 = vpack.i.b16 %v519, %v519
        %v524 = vpack.i.b16 %v520, %v520
        %v525 = vpack.i.b16 %v521, %v521
        %v526 = vpack.i.b16 %v522, %v522
        %v528 = vunpack.c.l.s4 286326784
        %v529 = vunpack.c.0.s8 %v528
        %v530 = vperm.slane %v523, %v529
        %v532 = vunpack.c.l.s4 286326784
        %v533 = vunpack.c.0.s8 %v532
        %v534 = vperm.slane %v524, %v533
        %v536 = vunpack.c.l.s4 286326784
        %v537 = vunpack.c.0.s8 %v536
        %v538 = vperm.slane %v525, %v537
        %v540 = vunpack.c.l.s4 286326784
        %v541 = vunpack.c.0.s8 %v540
        %v542 = vperm.slane %v526, %v541
        %vm547 = vcmask 59394
        %vm548 = vsmask.f32 2304
        %vm549 = vmand %vm547, %vm548
        %v550 = vld [vmem:[%s161] sm:$0x4]
        %v551 = vsel %vm549, %v530, %v550
        %552 = vst [vmem:[%s161] sm:$0x4] %v551
        %v553 = vld [vmem:[%s161 + $0x4] sm:$0x4]
        %v554 = vsel %vm549, %v534, %v553
        %555 = vst [vmem:[%s161 + $0x4] sm:$0x4] %v554
        %v556 = vld [vmem:[%s161 + $0x8] sm:$0x4]
        %v557 = vsel %vm549, %v538, %v556
        %558 = vst [vmem:[%s161 + $0x8] sm:$0x4] %v557
        %v559 = vld [vmem:[%s161 + $0xc] sm:$0x4]
        %v560 = vsel %vm549, %v542, %v559
        %561 = vst [vmem:[%s161 + $0xc] sm:$0x4] %v560
        %v562 = vld [vmem:[%s170 + $0x28] sm:$0xff]
        %v564 = vsel %vm174, %v562, 0
        %566 = vmatpush.xpose.msra.mxu0 0.0
        %567 = vmatpush.xpose.msra.mxu0 0.0
        %568 = vmatpush.xpose.msra.mxu0 0.0
        %569 = vmatpush.xpose.msra.mxu0 0.0
        %570 = vmatpush.xpose.msra.mxu0 0.0
        %571 = vmatpush.xpose.msra.mxu0 0.0
        %572 = vmatpush.xpose.msra.mxu0 0.0
        %573 = vmatpush.xpose.msra.mxu0 0.0
        %574 = vmatpush.xpose.msra.mxu0 0.0
        %575 = vmatpush.xpose.msra.mxu0 0.0
        %576 = vmatpush.xpose.msra.mxu0 0.0
        %577 = vmatpush.xpose.msra.mxu0 0.0
        %578 = vmatpush.xpose.msra.mxu0 0.0
        %579 = vmatpush.xpose.msra.mxu0 0.0
        %580 = vmatpush.xpose.msra.mxu0 0.0
        %581 = vmatpush.xpose.msra.mxu0 %v564
        %582 = vmatmul.f32.gmra.mxu0 %v176
        %v583 = vpop.f32.mrf.mxu0
        %v584 = vadd.f32 0.0, %v583
        %585 = vdwg.mxu0
        %v586 = vpack.c.bf16 %v584, %v584
        %v588 = vrot.slane %v586, 3
        %v591 = vsel %vm204, %v586, %v588
        %v593 = vsel %vm209, %v586, %v588
        %v595 = vrot.slane %v593, 1
        %v596 = vunpack.i.l.s16 %v591
        %v597 = vunpack.i.h.s16 %v591
        %v598 = vunpack.i.l.s16 %v595
        %v599 = vunpack.i.h.s16 %v595
        %v600 = vpack.i.b16 %v596, %v596
        %v601 = vpack.i.b16 %v597, %v597
        %v602 = vpack.i.b16 %v598, %v598
        %v603 = vpack.i.b16 %v599, %v599
        %v605 = vunpack.c.l.s4 286326784
        %v606 = vunpack.c.0.s8 %v605
        %v607 = vperm.slane %v600, %v606
        %v609 = vunpack.c.l.s4 286326784
        %v610 = vunpack.c.0.s8 %v609
        %v611 = vperm.slane %v601, %v610
        %v613 = vunpack.c.l.s4 286326784
        %v614 = vunpack.c.0.s8 %v613
        %v615 = vperm.slane %v602, %v614
        %v617 = vunpack.c.l.s4 286326784
        %v618 = vunpack.c.0.s8 %v617
        %v619 = vperm.slane %v603, %v618
        %vm624 = vsmask.f32 7946
        %vm625 = vmand %vm547, %vm624
        %v626 = vld [vmem:[%s161] sm:$0x4]
        %v627 = vsel %vm625, %v607, %v626
        %628 = vst [vmem:[%s161] sm:$0x4] %v627
        %v629 = vld [vmem:[%s161 + $0x4] sm:$0x4]
        %v630 = vsel %vm625, %v611, %v629
        %631 = vst [vmem:[%s161 + $0x4] sm:$0x4] %v630
        %v632 = vld [vmem:[%s161 + $0x8] sm:$0x4]
        %v633 = vsel %vm625, %v615, %v632
        %634 = vst [vmem:[%s161 + $0x8] sm:$0x4] %v633
        %v635 = vld [vmem:[%s161 + $0xc] sm:$0x4]
        %v636 = vsel %vm625, %v619, %v635
        %637 = vst [vmem:[%s161 + $0xc] sm:$0x4] %v636
        %v638 = vld [vmem:[%s170 + $0x30] sm:$0xff]
        %v640 = vsel %vm174, %v638, 0
        %642 = vmatpush.xpose.msra.mxu0 0.0
        %643 = vmatpush.xpose.msra.mxu0 0.0
        %644 = vmatpush.xpose.msra.mxu0 0.0
        %645 = vmatpush.xpose.msra.mxu0 0.0
        %646 = vmatpush.xpose.msra.mxu0 0.0
        %647 = vmatpush.xpose.msra.mxu0 0.0
        %648 = vmatpush.xpose.msra.mxu0 0.0
        %649 = vmatpush.xpose.msra.mxu0 0.0
        %650 = vmatpush.xpose.msra.mxu0 0.0
        %651 = vmatpush.xpose.msra.mxu0 0.0
        %652 = vmatpush.xpose.msra.mxu0 0.0
        %653 = vmatpush.xpose.msra.mxu0 0.0
        %654 = vmatpush.xpose.msra.mxu0 0.0
        %655 = vmatpush.xpose.msra.mxu0 0.0
        %656 = vmatpush.xpose.msra.mxu0 0.0
        %657 = vmatpush.xpose.msra.mxu0 %v640
        %658 = vmatmul.f32.gmra.mxu0 %v176
        %v659 = vpop.f32.mrf.mxu0
        %v660 = vadd.f32 0.0, %v659
        %661 = vdwg.mxu0
        %v662 = vpack.c.bf16 %v660, %v660
        %v664 = vrot.slane %v662, 3
        %v667 = vsel %vm204, %v662, %v664
        %v669 = vsel %vm209, %v662, %v664
        %v671 = vrot.slane %v669, 1
        %v672 = vunpack.i.l.s16 %v667
        %v673 = vunpack.i.h.s16 %v667
        %v674 = vunpack.i.l.s16 %v671
        %v675 = vunpack.i.h.s16 %v671
        %v676 = vpack.i.b16 %v672, %v672
        %v677 = vpack.i.b16 %v673, %v673
        %v678 = vpack.i.b16 %v674, %v674
        %v679 = vpack.i.b16 %v675, %v675
        %v681 = vunpack.c.l.s4 286326784
        %v682 = vunpack.c.0.s8 %v681
        %v683 = vperm.slane %v676, %v682
        %v685 = vunpack.c.l.s4 286326784
        %v686 = vunpack.c.0.s8 %v685
        %v687 = vperm.slane %v677, %v686
        %v689 = vunpack.c.l.s4 286326784
        %v690 = vunpack.c.0.s8 %v689
        %v691 = vperm.slane %v678, %v690
        %v693 = vunpack.c.l.s4 286326784
        %v694 = vunpack.c.0.s8 %v693
        %v695 = vperm.slane %v679, %v694
        %vm700 = vcmask 60419
        %vm701 = vsmask.f32 3328
        %vm702 = vmand %vm700, %vm701
        %v703 = vld [vmem:[%s161] sm:$0x8]
        %v704 = vsel %vm702, %v683, %v703
        %705 = vst [vmem:[%s161] sm:$0x8] %v704
        %v706 = vld [vmem:[%s161 + $0x4] sm:$0x8]
        %v707 = vsel %vm702, %v687, %v706
        %708 = vst [vmem:[%s161 + $0x4] sm:$0x8] %v707
        %v709 = vld [vmem:[%s161 + $0x8] sm:$0x8]
        %v710 = vsel %vm702, %v691, %v709
        %711 = vst [vmem:[%s161 + $0x8] sm:$0x8] %v710
        %v712 = vld [vmem:[%s161 + $0xc] sm:$0x8]
        %v713 = vsel %vm702, %v695, %v712
        %714 = vst [vmem:[%s161 + $0xc] sm:$0x8] %v713
        %v715 = vld [vmem:[%s170 + $0x38] sm:$0xff]
        %v717 = vsel %vm174, %v715, 0
        %719 = vmatpush.xpose.msra.mxu0 0.0
        %720 = vmatpush.xpose.msra.mxu0 0.0
        %721 = vmatpush.xpose.msra.mxu0 0.0
        %722 = vmatpush.xpose.msra.mxu0 0.0
        %723 = vmatpush.xpose.msra.mxu0 0.0
        %724 = vmatpush.xpose.msra.mxu0 0.0
        %725 = vmatpush.xpose.msra.mxu0 0.0
        %726 = vmatpush.xpose.msra.mxu0 0.0
        %727 = vmatpush.xpose.msra.mxu0 0.0
        %728 = vmatpush.xpose.msra.mxu0 0.0
        %729 = vmatpush.xpose.msra.mxu0 0.0
        %730 = vmatpush.xpose.msra.mxu0 0.0
        %731 = vmatpush.xpose.msra.mxu0 0.0
        %732 = vmatpush.xpose.msra.mxu0 0.0
        %733 = vmatpush.xpose.msra.mxu0 0.0
        %734 = vmatpush.xpose.msra.mxu0 %v717
        %735 = vmatmul.f32.gmra.mxu0 %v176
        %v736 = vpop.f32.mrf.mxu0
        %v737 = vadd.f32 0.0, %v736
        %738 = vdwg.mxu0
        %v739 = vpack.c.bf16 %v737, %v737
        %v741 = vrot.slane %v739, 3
        %v744 = vsel %vm204, %v739, %v741
        %v746 = vsel %vm209, %v739, %v741
        %v748 = vrot.slane %v746, 1
        %v749 = vunpack.i.l.s16 %v744
        %v750 = vunpack.i.h.s16 %v744
        %v751 = vunpack.i.l.s16 %v748
        %v752 = vunpack.i.h.s16 %v748
        %v753 = vpack.i.b16 %v749, %v749
        %v754 = vpack.i.b16 %v750, %v750
        %v755 = vpack.i.b16 %v751, %v751
        %v756 = vpack.i.b16 %v752, %v752
        %v758 = vunpack.c.l.s4 286326784
        %v759 = vunpack.c.0.s8 %v758
        %v760 = vperm.slane %v753, %v759
        %v762 = vunpack.c.l.s4 286326784
        %v763 = vunpack.c.0.s8 %v762
        %v764 = vperm.slane %v754, %v763
        %v766 = vunpack.c.l.s4 286326784
        %v767 = vunpack.c.0.s8 %v766
        %v768 = vperm.slane %v755, %v767
        %v770 = vunpack.c.l.s4 286326784
        %v771 = vunpack.c.0.s8 %v770
        %v772 = vperm.slane %v756, %v771
        %vm777 = vsmask.f32 7950
        %vm778 = vmand %vm700, %vm777
        %v779 = vld [vmem:[%s161] sm:$0x8]
        %v780 = vsel %vm778, %v760, %v779
        %781 = vst [vmem:[%s161] sm:$0x8] %v780
        %v782 = vld [vmem:[%s161 + $0x4] sm:$0x8]
        %v783 = vsel %vm778, %v764, %v782
        %784 = vst [vmem:[%s161 + $0x4] sm:$0x8] %v783
        %v785 = vld [vmem:[%s161 + $0x8] sm:$0x8]
        %v786 = vsel %vm778, %v768, %v785
        %787 = vst [vmem:[%s161 + $0x8] sm:$0x8] %v786
        %v788 = vld [vmem:[%s161 + $0xc] sm:$0x8]
        %v789 = vsel %vm778, %v772, %v788
        %790 = vst [vmem:[%s161 + $0xc] sm:$0x8] %v789
        %s791 = sand.u32 %s87, 1
        %s792 = scalar_lea.sflag [#allocation3], %s791
        %s793 = sand.u32 %s87, 1
        %s794 = smul.addr %s793, 16
        %s795 = scalar_lea.vmem [#allocation2], %s794
        // Predicated region
        $region29: #{tpu_custom_call.1} parent=27 // pred_check
          %p796 = pneg %p97
        $region30: #{tpu_custom_call.1} parent=27 // pred_check_branch
          %798 = sbr.rel (%p796) target = $region32
        $region31: #{tpu_custom_call.1} parent=27 // pred_region
          %800 = vsyncadd %s792, 0
          %s801 = smul.addr %s20, 4
          %s802 = sadd.s32 %s21, %s801
          %s803 = smul.addr %s802, 4
          %s804 = scalar_lea.hbm %s2, %s803
          %s805 = sshll.u32 %s795, 4
          %s806 = int_to_ptr.vmem [resolvable:$true] %s805
          %s807 = sshll.u32 %s804, 4
          %s808 = int_to_ptr.hbm [resolvable:$true] %s807
          %813 = dma.vmem_to_hbm [thread:$0]  %s806, 256, %s808, %s792, 64, 64, 4
        $region32: #{tpu_custom_call.1} parent=27 // pred_fallthru
          _
      $region28: #{tpu_custom_call.1} parent=5 // pred_fallthru
        _
      %p814 = scmp.le.s32.totalorder 2, %s11
      // Predicated region
      $region33: #{tpu_custom_call.1} parent=5 // pred_check
        %p815 = pneg %p814
      $region34: #{tpu_custom_call.1} parent=5 // pred_check_branch
        %817 = sbr.rel (%p815) target = $region36
      $region35: #{tpu_custom_call.1} parent=5 // pred_region
        %s818 = ssub.s32 %s11, 2
        // Predicated region
        $region37: #{tpu_custom_call.1} parent=35 // pred_check
          %p819 = pneg %p103
        $region38: #{tpu_custom_call.1} parent=35 // pred_check_branch
          %821 = sbr.rel (%p819) target = $region40
        $region39: #{tpu_custom_call.1} parent=35 // pred_region
          %s822 = sand.u32 %s88, 1
          %s823 = scalar_lea.sflag [#allocation3], %s822
          %s824 = sand.u32 %s88, 1
          %s825 = smul.addr %s824, 16
          %s826 = scalar_lea.vmem [#allocation2], %s825
          %828 = dma.done %s823, 256
        $region40: #{tpu_custom_call.1} parent=35 // pred_fallthru
          _
      $region36: #{tpu_custom_call.1} parent=5 // pred_fallthru
        _
    $region6: #{tpu_custom_call.1} parent=1 // loop_footer
      %s15 = sadd.s32 1, %s11
    $region7: #{tpu_custom_call.1} parent=1 // loop_footer_branch
      %10 = sbr.rel target = $region3
    $region8: #{tpu_custom_call.1} parent=1 // loop_exit
      _
    %829 = vsyncpa [#allocation3], 1
    %s830 = scalar_lea.sflag [#allocation3], 1
    %831 = vsyncpa %s830, 1

</llo_original>
